<compile_context>
chip_gen: v5e
topology: v5e:2x2
jax: 0.10.0
libtpu: 0.0.40
codegen_flags: <defaults>
</compile_context>

<pallas_src>
import numpy as np
import jax
import jax.numpy as jnp
from jax.experimental import pallas as pl
from jax.experimental.pallas import tpu as pltpu


def _round_up(x, m):
    return (x + m - 1) // m * m


def policy_mlp_kernel(x_ref, w1_ref, b1_ref, w2_ref, b2_ref, w3_ref, b3_ref, out_ref):
    # layer 1 + ReLU (bf16 operands, f32 accumulate)
    x = x_ref[...]
    h1 = jnp.dot(x, w1_ref[...], preferred_element_type=jnp.float32) + b1_ref[...]
    h1 = jnp.maximum(h1, 0.0).astype(jnp.bfloat16)
    # layer 2 + ReLU
    h2 = jnp.dot(h1, w2_ref[...], preferred_element_type=jnp.float32) + b2_ref[...]
    h2 = jnp.maximum(h2, 0.0).astype(jnp.bfloat16)
    # output layer + tanh
    o = jnp.dot(h2, w3_ref[...], preferred_element_type=jnp.float32) + b3_ref[...]
    out_ref[...] = jnp.tanh(o).astype(out_ref.dtype)


def prepare_policy_params(params, lane=128):
    """Zero-pad every feature dim up to a multiple of 128 and cast weights to bf16.

    Zero padding is numerically exact through the affine+ReLU layers (padded
    input features hit zero weight rows; padded hidden units have zero bias and
    zero outgoing weights). Call once; reuse the result for every forward.
    """
    w1, b1 = params["w1"], params["b1"]
    w2, b2 = params["w2"], params["b2"]
    w3, b3 = params["w3"], params["b3"]
    S, H1 = w1.shape
    H2 = w2.shape[1]
    A = w3.shape[1]
    Sp, H1p, H2p, Ap = (_round_up(d, lane) for d in (S, H1, H2, A))

    def pad2(a, r, c):
        return jnp.pad(a, ((0, r - a.shape[0]), (0, c - a.shape[1])))

    return {
        "w1": pad2(w1, Sp, H1p).astype(jnp.bfloat16),
        "b1": pad2(b1, 1, H1p).astype(jnp.float32),
        "w2": pad2(w2, H1p, H2p).astype(jnp.bfloat16),
        "b2": pad2(b2, 1, H2p).astype(jnp.float32),
        "w3": pad2(w3, H2p, Ap).astype(jnp.bfloat16),
        "b3": pad2(b3, 1, Ap).astype(jnp.float32),
        "state_size": S,
        "action_size": A,
    }


def policy_network_forward(state, prepped, tile_m=512):
    """state: (B, state_size) f32. prepped: output of prepare_policy_params."""
    B, S = state.shape
    Sp = prepped["w1"].shape[0]
    Ap = prepped["w3"].shape[1]
    A = prepped["action_size"]

    # Batch tile: multiple of 8 (sublane), capped so the double-buffered
    # tiles + f32 intermediates stay far under the scoped VMEM limit on all gens.
    TM = min(tile_m, _round_up(B, 8))
    B_pad = _round_up(B, TM)

    x = jnp.pad(state.astype(jnp.bfloat16), ((0, B_pad - B), (0, Sp - S)))

    w1, b1 = prepped["w1"], prepped["b1"]
    w2, b2 = prepped["w2"], prepped["b2"]
    w3, b3 = prepped["w3"], prepped["b3"]

    out = pl.pallas_call(
        policy_mlp_kernel,
        out_shape=jax.ShapeDtypeStruct((B_pad, Ap), jnp.float32),
        grid=(B_pad // TM,),
        in_specs=[
            pl.BlockSpec((TM, Sp), lambda i: (i, 0)),       # state tile, pipelined
            pl.BlockSpec(w1.shape, lambda i: (0, 0)),       # weights/biases resident
            pl.BlockSpec(b1.shape, lambda i: (0, 0)),
            pl.BlockSpec(w2.shape, lambda i: (0, 0)),
            pl.BlockSpec(b2.shape, lambda i: (0, 0)),
            pl.BlockSpec(w3.shape, lambda i: (0, 0)),
            pl.BlockSpec(b3.shape, lambda i: (0, 0)),
        ],
        out_specs=pl.BlockSpec((TM, Ap), lambda i: (i, 0)),  # lane-dense (128) store
        compiler_params=pltpu.CompilerParams(
            dimension_semantics=("parallel",),               # v7x: shard batch over 2 TCs
            vmem_limit_bytes=32 * 1024 * 1024,               # headroom beyond v5e's 16 MiB default
        ),
    )(x, w1, b1, w2, b2, w3, b3)

    return out[:B, :A]


def init_policy_params(key, state_size, action_size, hidden_layer_sizes=(400, 300)):
    """Deterministic init mirroring Policy_network.reset_parameters().

    hidden_init() in the reference uses weight.size()[0] == out_features as
    'fan_in' (faithfully reproduced). Biases keep PyTorch's default Linear init
    range uniform(-1/sqrt(in_features), 1/sqrt(in_features)).
    Weights stored as (in_features, out_features), i.e. transposed vs PyTorch.
    """
    h1, h2 = hidden_layer_sizes
    k = jax.random.split(key, 6)

    lim1 = 1.0 / np.sqrt(h1)
    lim2 = 1.0 / np.sqrt(h2)
    lim3 = 0.003

    b1_lim = 1.0 / np.sqrt(state_size)
    b2_lim = 1.0 / np.sqrt(h1)
    b3_lim = 1.0 / np.sqrt(h2)

    return {
        "w1": jax.random.uniform(k[0], (state_size, h1), jnp.float32, -lim1, lim1),
        "b1": jax.random.uniform(k[1], (1, h1), jnp.float32, -b1_lim, b1_lim),
        "w2": jax.random.uniform(k[2], (h1, h2), jnp.float32, -lim2, lim2),
        "b2": jax.random.uniform(k[3], (1, h2), jnp.float32, -b2_lim, b2_lim),
        "w3": jax.random.uniform(k[4], (h2, action_size), jnp.float32, -lim3, lim3),
        "b3": jax.random.uniform(k[5], (1, action_size), jnp.float32, -b3_lim, b3_lim),
    }


def reference_forward(state, params):
    h1 = jnp.maximum(state @ params["w1"] + params["b1"], 0.0)
    h2 = jnp.maximum(h1 @ params["w2"] + params["b2"], 0.0)
    return jnp.tanh(h2 @ params["w3"] + params["b3"])


if __name__ == "__main__":
    key = jax.random.PRNGKey(0)
    k_param, k_state = jax.random.split(key)

    # Small shapes consistent with the module's forward pass.
    batch = 8
    state_size = 32
    action_size = 8
    hidden_layer_sizes = (400, 300)   # module defaults

    params = init_policy_params(k_param, state_size, action_size, hidden_layer_sizes)
    prepped = prepare_policy_params(params)
    state = jax.random.normal(k_state, (batch, state_size), jnp.float32)

    out = policy_network_forward(state, prepped)
    out = jax.block_until_ready(out)

    ref = reference_forward(state, params)   # f32 reference
    # bf16 weights/activations in the kernel -> loosened tolerance vs f32 ref.
    np.testing.assert_allclose(np.asarray(out), np.asarray(ref), rtol=2e-2, atol=2e-3)
    assert out.shape == (batch, action_size)

    print("KERNEL_OK")
</pallas_src>

<mosaic_0001>
module attributes {stable_mosaic.version = 11 : i64} {
  func.func @policy_mlp_kernel(%arg0: i32, %arg1: memref<8x128xbf16, #tpu.memory_space<vmem>>, %arg2: memref<128x512xbf16, #tpu.memory_space<vmem>>, %arg3: memref<1x512xf32, #tpu.memory_space<vmem>>, %arg4: memref<512x384xbf16, #tpu.memory_space<vmem>>, %arg5: memref<1x384xf32, #tpu.memory_space<vmem>>, %arg6: memref<384x128xbf16, #tpu.memory_space<vmem>>, %arg7: memref<1x128xf32, #tpu.memory_space<vmem>>, %arg8: memref<8x128xf32, #tpu.memory_space<vmem>>) attributes {dimension_semantics = [#tpu.dimension_semantics<parallel>], iteration_bounds = array<i64: 1>, scalar_prefetch = 0 : i64, scratch_operands = 0 : i64, tpu.core_type = #tpu.core_type<tc>, window_params = [{transform_indices = @transform_0, window_bounds = array<i64: 8, 128>}, {pipeline_mode = #tpu.pipeline_mode<synchronous>, transform_indices = @transform_1, window_bounds = array<i64: 128, 512>}, {pipeline_mode = #tpu.pipeline_mode<synchronous>, transform_indices = @transform_2, window_bounds = array<i64: 1, 512>}, {pipeline_mode = #tpu.pipeline_mode<synchronous>, transform_indices = @transform_3, window_bounds = array<i64: 512, 384>}, {pipeline_mode = #tpu.pipeline_mode<synchronous>, transform_indices = @transform_4, window_bounds = array<i64: 1, 384>}, {pipeline_mode = #tpu.pipeline_mode<synchronous>, transform_indices = @transform_5, window_bounds = array<i64: 384, 128>}, {pipeline_mode = #tpu.pipeline_mode<synchronous>, transform_indices = @transform_6, window_bounds = array<i64: 1, 128>}, {transform_indices = @transform_7, window_bounds = array<i64: 8, 128>}]} {
    %c0 = arith.constant 0 : index
    %c0_0 = arith.constant 0 : index
    %0 = vector.load %arg1[%c0, %c0_0] : memref<8x128xbf16, #tpu.memory_space<vmem>>, vector<8x128xbf16>
    %c0_1 = arith.constant 0 : index
    %c0_2 = arith.constant 0 : index
    %1 = vector.load %arg2[%c0_1, %c0_2] : memref<128x512xbf16, #tpu.memory_space<vmem>>, vector<128x512xbf16>
    %cst = arith.constant dense<0.000000e+00> : vector<8x512xf32>
    %2 = tpu.matmul %0, %1, %cst {dimension_numbers = #tpu.dot_dimension_numbers<[1], [0], [0], [1], [0, 0, 1, 1], [], []>} : vector<8x128xbf16>, vector<128x512xbf16>, vector<8x512xf32> -> vector<8x512xf32>
    %c0_3 = arith.constant 0 : index
    %c0_4 = arith.constant 0 : index
    %3 = vector.load %arg3[%c0_3, %c0_4] : memref<1x512xf32, #tpu.memory_space<vmem>>, vector<1x512xf32>
    %4 = vector.broadcast %3 : vector<1x512xf32> to vector<8x512xf32>
    %5 = arith.addf %2, %4 : vector<8x512xf32>
    %cst_5 = arith.constant 0.000000e+00 : f32
    %6 = vector.broadcast %cst_5 : f32 to vector<8x512xf32>
    %7 = arith.maximumf %5, %6 : vector<8x512xf32>
    %8 = arith.truncf %7 : vector<8x512xf32> to vector<8x512xbf16>
    %c0_6 = arith.constant 0 : index
    %c0_7 = arith.constant 0 : index
    %9 = vector.load %arg4[%c0_6, %c0_7] : memref<512x384xbf16, #tpu.memory_space<vmem>>, vector<512x384xbf16>
    %cst_8 = arith.constant dense<0.000000e+00> : vector<8x384xf32>
    %10 = tpu.matmul %8, %9, %cst_8 {dimension_numbers = #tpu.dot_dimension_numbers<[1], [0], [0], [1], [0, 0, 1, 1], [], []>} : vector<8x512xbf16>, vector<512x384xbf16>, vector<8x384xf32> -> vector<8x384xf32>
    %c0_9 = arith.constant 0 : index
    %c0_10 = arith.constant 0 : index
    %11 = vector.load %arg5[%c0_9, %c0_10] : memref<1x384xf32, #tpu.memory_space<vmem>>, vector<1x384xf32>
    %12 = vector.broadcast %11 : vector<1x384xf32> to vector<8x384xf32>
    %13 = arith.addf %10, %12 : vector<8x384xf32>
    %cst_11 = arith.constant 0.000000e+00 : f32
    %14 = vector.broadcast %cst_11 : f32 to vector<8x384xf32>
    %15 = arith.maximumf %13, %14 : vector<8x384xf32>
    %16 = arith.truncf %15 : vector<8x384xf32> to vector<8x384xbf16>
    %c0_12 = arith.constant 0 : index
    %c0_13 = arith.constant 0 : index
    %17 = vector.load %arg6[%c0_12, %c0_13] : memref<384x128xbf16, #tpu.memory_space<vmem>>, vector<384x128xbf16>
    %cst_14 = arith.constant dense<0.000000e+00> : vector<8x128xf32>
    %18 = tpu.matmul %16, %17, %cst_14 {dimension_numbers = #tpu.dot_dimension_numbers<[1], [0], [0], [1], [0, 0, 1, 1], [], []>} : vector<8x384xbf16>, vector<384x128xbf16>, vector<8x128xf32> -> vector<8x128xf32>
    %c0_15 = arith.constant 0 : index
    %c0_16 = arith.constant 0 : index
    %19 = vector.load %arg7[%c0_15, %c0_16] : memref<1x128xf32, #tpu.memory_space<vmem>>, vector<1x128xf32>
    %20 = vector.broadcast %19 : vector<1x128xf32> to vector<8x128xf32>
    %21 = arith.addf %18, %20 : vector<8x128xf32>
    %22 = math.tanh %21 : vector<8x128xf32>
    %c0_17 = arith.constant 0 : index
    %c0_18 = arith.constant 0 : index
    %23 = vector.load %arg8[%c0_17, %c0_18] : memref<8x128xf32, #tpu.memory_space<vmem>>, vector<8x128xf32>
    tpu.vector_store %arg8[%c0_17, %c0_18], %22 {strides = array<i32>} : memref<8x128xf32, #tpu.memory_space<vmem>>, vector<8x128xf32>,
    return
  }
  func.func @transform_0(%arg0: i32) -> (i32, i32) {
    %c0_i32 = arith.constant 0 : i32
    %c0_i32_0 = arith.constant 0 : i32
    return %arg0, %c0_i32 : i32, i32
  }
  func.func @transform_1(%arg0: i32) -> (i32, i32) {
    %c0_i32 = arith.constant 0 : i32
    %c0_i32_0 = arith.constant 0 : i32
    %c0_i32_1 = arith.constant 0 : i32
    return %c0_i32, %c0_i32_0 : i32, i32
  }
  func.func @transform_2(%arg0: i32) -> (i32, i32) {
    %c0_i32 = arith.constant 0 : i32
    %c0_i32_0 = arith.constant 0 : i32
    %c0_i32_1 = arith.constant 0 : i32
    return %c0_i32, %c0_i32_0 : i32, i32
  }
  func.func @transform_3(%arg0: i32) -> (i32, i32) {
    %c0_i32 = arith.constant 0 : i32
    %c0_i32_0 = arith.constant 0 : i32
    %c0_i32_1 = arith.constant 0 : i32
    return %c0_i32, %c0_i32_0 : i32, i32
  }
  func.func @transform_4(%arg0: i32) -> (i32, i32) {
    %c0_i32 = arith.constant 0 : i32
    %c0_i32_0 = arith.constant 0 : i32
    %c0_i32_1 = arith.constant 0 : i32
    return %c0_i32, %c0_i32_0 : i32, i32
  }
  func.func @transform_5(%arg0: i32) -> (i32, i32) {
    %c0_i32 = arith.constant 0 : i32
    %c0_i32_0 = arith.constant 0 : i32
    %c0_i32_1 = arith.constant 0 : i32
    return %c0_i32, %c0_i32_0 : i32, i32
  }
  func.func @transform_6(%arg0: i32) -> (i32, i32) {
    %c0_i32 = arith.constant 0 : i32
    %c0_i32_0 = arith.constant 0 : i32
    %c0_i32_1 = arith.constant 0 : i32
    return %c0_i32, %c0_i32_0 : i32, i32
  }
  func.func @transform_7(%arg0: i32) -> (i32, i32) {
    %c0_i32 = arith.constant 0 : i32
    %c0_i32_0 = arith.constant 0 : i32
    return %arg0, %c0_i32 : i32, i32
  }
}

</mosaic_0001>

<llo_original>
// kernel: tpu_custom_call.1
$region0: #{tpu_custom_call.1}
  #allocation0 [shape = 'u32[]', space=smem, size = 0x4, offset = 0x4, fixed_abs, tag = 'smem constant byte address 0x4 - core index']
  #allocation1 [shape = 'u32[72,128]{1,0:T(1,128)}', space=vmem, size = 0x9000, scoped, tag = 'internal scratch']
  %s0 = inlined_call_operand.hbm [shape: bf16[8,128], index: 0, kind: input, shape index: {}]
  %s1 = inlined_call_operand.hbm [shape: bf16[128,512], index: 1, kind: input, shape index: {}]
  %s2 = inlined_call_operand.hbm [shape: f32[1,512], index: 2, kind: input, shape index: {}]
  %s3 = inlined_call_operand.hbm [shape: bf16[512,384], index: 3, kind: input, shape index: {}]
  %s4 = inlined_call_operand.vmem [shape: f32[1,384], index: 4, kind: input, shape index: {}]
  %s5 = inlined_call_operand.hbm [shape: bf16[384,128], index: 5, kind: input, shape index: {}]
  %s6 = inlined_call_operand.vmem [shape: f32[1,128], index: 6, kind: input, shape index: {}]
  %s7 = inlined_call_operand.hbm [shape: f32[8,128], index: 7, kind: output, shape index: {}]
  %s8 = sld [smem:[#allocation0]]
  $region58: #{tpu_custom_call.1} parent=0
    _
  %s10 = ssub.s32 1, %s8
  %s11 = scalar_select 0, %s10, %s8
  $region1: #{tpu_custom_call.1} parent=0
    #allocation2 [shape = 'u8[2048]{0}', space=vmem, size = 0x800, scoped, tag = 'input window, operand 0, single buffered']
    #allocation3 [shape = 's32[1]{0}', space=sflag, size = 0x4, scoped, tag = 'scoped memory for tpu_custom_call.1']
    #allocation4 [shape = 's32[1]{0}', space=sflag, size = 0x4, scoped, tag = 'scoped memory for tpu_custom_call.1']
    #allocation5 [shape = 'u8[131072]{0}', space=vmem, size = 0x20000, scoped, tag = 'input window, operand 1, single buffered']
    #allocation6 [shape = 's32[1]{0}', space=sflag, size = 0x4, scoped, tag = 'scoped memory for tpu_custom_call.1']
    #allocation7 [shape = 'u8[2048]{0}', space=vmem, size = 0x800, scoped, tag = 'input window, operand 2, single buffered']
    #allocation8 [shape = 'u8[393216]{0}', space=vmem, size = 0x60000, scoped, tag = 'input window, operand 3, single buffered']
    #allocation9 [shape = 's32[1]{0}', space=sflag, size = 0x4, scoped, tag = 'scoped memory for tpu_custom_call.1']
    #allocation10 [shape = 'u8[98304]{0}', space=vmem, size = 0x18000, scoped, tag = 'input window, operand 5, single buffered']
    #allocation11 [shape = 'u8[4096]{0}', space=vmem, size = 0x1000, scoped, tag = 'output window, operand 0, single buffered']
    %12 = vsyncpa [#allocation3], 0
    %13 = vsyncpa [#allocation6], 0
    %14 = vsyncpa [#allocation9], 0
    %15 = vsyncpa [#allocation4], 0
    // Predicated region
    $region2: #{tpu_custom_call.1} parent=1 // pred_check
      _
    $region3: #{tpu_custom_call.1} parent=1 // pred_check_branch
      %17 = sbr.rel (0) target = $region5
    $region4: #{tpu_custom_call.1} parent=1 // pred_region
      %19 = vsyncadd [#allocation3], 0
      %s21 = sshll.u32 %s0, 4
      %s22 = int_to_ptr.hbm [resolvable:$true] %s21
      %s23 = sshll.u32 [#allocation2], 4
      %s24 = int_to_ptr.vmem [resolvable:$true] %s23
      %26 = dma.hbm_to_vmem [thread:$0]  %s22, 64, %s24, [#allocation3]
    $region5: #{tpu_custom_call.1} parent=1 // pred_fallthru
      _
    // Predicated region
    $region6: #{tpu_custom_call.1} parent=1 // pred_check
      _
    $region7: #{tpu_custom_call.1} parent=1 // pred_check_branch
      %28 = sbr.rel (0) target = $region9
    $region8: #{tpu_custom_call.1} parent=1 // pred_region
      %30 = vsyncadd [#allocation6], 0
      %s31 = sshll.u32 %s1, 4
      %s32 = int_to_ptr.hbm [resolvable:$true] %s31
      %s33 = sshll.u32 [#allocation5], 4
      %s34 = int_to_ptr.vmem [resolvable:$true] %s33
      %39 = dma.hbm_to_vmem [thread:$0]  %s32, 4096, %s34, [#allocation6], 256, 256, 16
    $region9: #{tpu_custom_call.1} parent=1 // pred_fallthru
      _
    // Predicated region
    $region10: #{tpu_custom_call.1} parent=1 // pred_check
      _
    $region11: #{tpu_custom_call.1} parent=1 // pred_check_branch
      %41 = sbr.rel (0) target = $region13
    $region12: #{tpu_custom_call.1} parent=1 // pred_region
      %43 = vsyncadd [#allocation6], 0
      %s45 = sshll.u32 %s2, 4
      %s46 = int_to_ptr.hbm [resolvable:$true] %s45
      %s47 = sshll.u32 [#allocation7], 4
      %s48 = int_to_ptr.vmem [resolvable:$true] %s47
      %50 = dma.hbm_to_vmem [thread:$0]  %s46, 64, %s48, [#allocation6]
    $region13: #{tpu_custom_call.1} parent=1 // pred_fallthru
      _
    // Predicated region
    $region14: #{tpu_custom_call.1} parent=1 // pred_check
      _
    $region15: #{tpu_custom_call.1} parent=1 // pred_check_branch
      %52 = sbr.rel (0) target = $region17
    $region16: #{tpu_custom_call.1} parent=1 // pred_region
      %54 = vsyncadd [#allocation9], 0
      %s55 = sshll.u32 %s3, 4
      %s56 = int_to_ptr.hbm [resolvable:$true] %s55
      %s57 = sshll.u32 [#allocation8], 4
      %s58 = int_to_ptr.vmem [resolvable:$true] %s57
      %63 = dma.hbm_to_vmem [thread:$0]  %s56, 12288, %s58, [#allocation9], 192, 192, 12
    $region17: #{tpu_custom_call.1} parent=1 // pred_fallthru
      _
    // Predicated region
    $region18: #{tpu_custom_call.1} parent=1 // pred_check
      _
    $region19: #{tpu_custom_call.1} parent=1 // pred_check_branch
      %65 = sbr.rel (0) target = $region21
    $region20: #{tpu_custom_call.1} parent=1 // pred_region
      _
    $region21: #{tpu_custom_call.1} parent=1 // pred_fallthru
      _
    // Predicated region
    $region22: #{tpu_custom_call.1} parent=1 // pred_check
      _
    $region23: #{tpu_custom_call.1} parent=1 // pred_check_branch
      %67 = sbr.rel (0) target = $region25
    $region24: #{tpu_custom_call.1} parent=1 // pred_region
      %69 = vsyncadd [#allocation9], 0
      %s70 = sshll.u32 %s5, 4
      %s71 = int_to_ptr.hbm [resolvable:$true] %s70
      %s72 = sshll.u32 [#allocation10], 4
      %s73 = int_to_ptr.vmem [resolvable:$true] %s72
      %78 = dma.hbm_to_vmem [thread:$0]  %s71, 3072, %s73, [#allocation9], 64, 64, 4
    $region25: #{tpu_custom_call.1} parent=1 // pred_fallthru
      _
    // Predicated region
    $region26: #{tpu_custom_call.1} parent=1 // pred_check
      _
    $region27: #{tpu_custom_call.1} parent=1 // pred_check_branch
      %80 = sbr.rel (0) target = $region29
    $region28: #{tpu_custom_call.1} parent=1 // pred_region
      _
    $region29: #{tpu_custom_call.1} parent=1 // pred_fallthru
      _
    // Predicated region
    $region30: #{tpu_custom_call.1} parent=1 // pred_check
      _
    $region31: #{tpu_custom_call.1} parent=1 // pred_check_branch
      %82 = sbr.rel (0) target = $region33
    $region32: #{tpu_custom_call.1} parent=1 // pred_region
      %84 = dma.done [#allocation3], 64
    $region33: #{tpu_custom_call.1} parent=1 // pred_fallthru
      _
    // Predicated region
    $region34: #{tpu_custom_call.1} parent=1 // pred_check
      _
    $region35: #{tpu_custom_call.1} parent=1 // pred_check_branch
      %86 = sbr.rel (0) target = $region37
    $region36: #{tpu_custom_call.1} parent=1 // pred_region
      %88 = dma.done [#allocation6], 4096
    $region37: #{tpu_custom_call.1} parent=1 // pred_fallthru
      _
    // Predicated region
    $region38: #{tpu_custom_call.1} parent=1 // pred_check
      _
    $region39: #{tpu_custom_call.1} parent=1 // pred_check_branch
      %90 = sbr.rel (0) target = $region41
    $region40: #{tpu_custom_call.1} parent=1 // pred_region
      %92 = dma.done [#allocation6], 64
    $region41: #{tpu_custom_call.1} parent=1 // pred_fallthru
      _
    // Predicated region
    $region42: #{tpu_custom_call.1} parent=1 // pred_check
      _
    $region43: #{tpu_custom_call.1} parent=1 // pred_check_branch
      %94 = sbr.rel (0) target = $region45
    $region44: #{tpu_custom_call.1} parent=1 // pred_region
      %96 = dma.done [#allocation9], 12288
    $region45: #{tpu_custom_call.1} parent=1 // pred_fallthru
      _
    // Predicated region
    $region46: #{tpu_custom_call.1} parent=1 // pred_check
      _
    $region47: #{tpu_custom_call.1} parent=1 // pred_check_branch
      %98 = sbr.rel (0) target = $region49
    $region48: #{tpu_custom_call.1} parent=1 // pred_region
      %100 = dma.done [#allocation9], 3072
    $region49: #{tpu_custom_call.1} parent=1 // pred_fallthru
      _
    %v101 = vld [vmem:[#allocation2] sm:$0xf]
    %v102 = vld [vmem:[#allocation5] sm:$0xff]
    %v103 = vld [vmem:[#allocation5 + $0x8] sm:$0xff]
    %v104 = vld [vmem:[#allocation5 + $0x10] sm:$0xff]
    %v105 = vld [vmem:[#allocation5 + $0x18] sm:$0xff]
    %v106 = vld [vmem:[#allocation5 + $0x20] sm:$0xff]
    %v107 = vld [vmem:[#allocation5 + $0x28] sm:$0xff]
    %v108 = vld [vmem:[#allocation5 + $0x30] sm:$0xff]
    %v109 = vld [vmem:[#allocation5 + $0x38] sm:$0xff]
    %v110 = vld [vmem:[#allocation5 + $0x40] sm:$0xff]
    %v111 = vld [vmem:[#allocation5 + $0x48] sm:$0xff]
    %v112 = vld [vmem:[#allocation5 + $0x50] sm:$0xff]
    %v113 = vld [vmem:[#allocation5 + $0x58] sm:$0xff]
    %v114 = vld [vmem:[#allocation5 + $0x60] sm:$0xff]
    %v115 = vld [vmem:[#allocation5 + $0x68] sm:$0xff]
    %v116 = vld [vmem:[#allocation5 + $0x70] sm:$0xff]
    %v117 = vld [vmem:[#allocation5 + $0x78] sm:$0xff]
    %v118 = vld [vmem:[#allocation5 + $0x80] sm:$0xff]
    %v119 = vld [vmem:[#allocation5 + $0x88] sm:$0xff]
    %v120 = vld [vmem:[#allocation5 + $0x90] sm:$0xff]
    %v121 = vld [vmem:[#allocation5 + $0x98] sm:$0xff]
    %v122 = vld [vmem:[#allocation5 + $0xa0] sm:$0xff]
    %v123 = vld [vmem:[#allocation5 + $0xa8] sm:$0xff]
    %v124 = vld [vmem:[#allocation5 + $0xb0] sm:$0xff]
    %v125 = vld [vmem:[#allocation5 + $0xb8] sm:$0xff]
    %v126 = vld [vmem:[#allocation5 + $0xc0] sm:$0xff]
    %v127 = vld [vmem:[#allocation5 + $0xc8] sm:$0xff]
    %v128 = vld [vmem:[#allocation5 + $0xd0] sm:$0xff]
    %v129 = vld [vmem:[#allocation5 + $0xd8] sm:$0xff]
    %v130 = vld [vmem:[#allocation5 + $0xe0] sm:$0xff]
    %v131 = vld [vmem:[#allocation5 + $0xe8] sm:$0xff]
    %v132 = vld [vmem:[#allocation5 + $0xf0] sm:$0xff]
    %v133 = vld [vmem:[#allocation5 + $0xf8] sm:$0xff]
    %v134 = vld [vmem:[#allocation7] sm:$0xf]
    %v136 = vperm.slane %v134, 0
    %v137 = vperm.slane %v134, 1
    %v138 = vperm.slane %v134, 2
    %v139 = vperm.slane %v134, 3
    %v176 = vunpack.c.l.b16 %v102
    %v177 = vunpack.c.h.b16 %v102
    %v178 = vunpack.c.l.b16 %v103
    %v179 = vunpack.c.h.b16 %v103
    %v180 = vunpack.c.l.b16 %v104
    %v181 = vunpack.c.h.b16 %v104
    %v182 = vunpack.c.l.b16 %v105
    %v183 = vunpack.c.h.b16 %v105
    %v184 = vunpack.c.l.b16 %v106
    %v185 = vunpack.c.h.b16 %v106
    %v186 = vunpack.c.l.b16 %v107
    %v187 = vunpack.c.h.b16 %v107
    %v188 = vunpack.c.l.b16 %v108
    %v189 = vunpack.c.h.b16 %v108
    %v190 = vunpack.c.l.b16 %v109
    %v191 = vunpack.c.h.b16 %v109
    %v192 = vunpack.c.l.b16 %v110
    %v193 = vunpack.c.h.b16 %v110
    %v194 = vunpack.c.l.b16 %v111
    %v195 = vunpack.c.h.b16 %v111
    %v196 = vunpack.c.l.b16 %v112
    %v197 = vunpack.c.h.b16 %v112
    %v198 = vunpack.c.l.b16 %v113
    %v199 = vunpack.c.h.b16 %v113
    %v200 = vunpack.c.l.b16 %v114
    %v201 = vunpack.c.h.b16 %v114
    %v202 = vunpack.c.l.b16 %v115
    %v203 = vunpack.c.h.b16 %v115
    %v204 = vunpack.c.l.b16 %v116
    %v205 = vunpack.c.h.b16 %v116
    %v206 = vunpack.c.l.b16 %v117
    %v207 = vunpack.c.h.b16 %v117
    %v208 = vunpack.c.l.b16 %v118
    %v209 = vunpack.c.h.b16 %v118
    %v210 = vunpack.c.l.b16 %v119
    %v211 = vunpack.c.h.b16 %v119
    %v212 = vunpack.c.l.b16 %v120
    %v213 = vunpack.c.h.b16 %v120
    %v214 = vunpack.c.l.b16 %v121
    %v215 = vunpack.c.h.b16 %v121
    %v216 = vunpack.c.l.b16 %v122
    %v217 = vunpack.c.h.b16 %v122
    %v218 = vunpack.c.l.b16 %v123
    %v219 = vunpack.c.h.b16 %v123
    %v220 = vunpack.c.l.b16 %v124
    %v221 = vunpack.c.h.b16 %v124
    %v222 = vunpack.c.l.b16 %v125
    %v223 = vunpack.c.h.b16 %v125
    %v224 = vunpack.c.l.b16 %v126
    %v225 = vunpack.c.h.b16 %v126
    %v226 = vunpack.c.l.b16 %v127
    %v227 = vunpack.c.h.b16 %v127
    %v228 = vunpack.c.l.b16 %v128
    %v229 = vunpack.c.h.b16 %v128
    %v230 = vunpack.c.l.b16 %v129
    %v231 = vunpack.c.h.b16 %v129
    %v232 = vunpack.c.l.b16 %v130
    %v233 = vunpack.c.h.b16 %v130
    %v234 = vunpack.c.l.b16 %v131
    %v235 = vunpack.c.h.b16 %v131
    %v236 = vunpack.c.l.b16 %v132
    %v237 = vunpack.c.h.b16 %v132
    %v238 = vunpack.c.l.b16 %v133
    %v239 = vunpack.c.h.b16 %v133
    %v240 = vpack.c.b16 %v180, %v176
    %v241 = vpack.c.b16 %v181, %v177
    %v242 = vpack.c.b16 %v182, %v178
    %v243 = vpack.c.b16 %v183, %v179
    %v244 = vpack.c.b16 %v188, %v184
    %v245 = vpack.c.b16 %v189, %v185
    %v246 = vpack.c.b16 %v190, %v186
    %v247 = vpack.c.b16 %v191, %v187
    %v248 = vpack.c.b16 %v196, %v192
    %v249 = vpack.c.b16 %v197, %v193
    %v250 = vpack.c.b16 %v198, %v194
    %v251 = vpack.c.b16 %v199, %v195
    %v252 = vpack.c.b16 %v204, %v200
    %v253 = vpack.c.b16 %v205, %v201
    %v254 = vpack.c.b16 %v206, %v202
    %v255 = vpack.c.b16 %v207, %v203
    %v256 = vpack.c.b16 %v212, %v208
    %v257 = vpack.c.b16 %v213, %v209
    %v258 = vpack.c.b16 %v214, %v210
    %v259 = vpack.c.b16 %v215, %v211
    %v260 = vpack.c.b16 %v220, %v216
    %v261 = vpack.c.b16 %v221, %v217
    %v262 = vpack.c.b16 %v222, %v218
    %v263 = vpack.c.b16 %v223, %v219
    %v264 = vpack.c.b16 %v228, %v224
    %v265 = vpack.c.b16 %v229, %v225
    %v266 = vpack.c.b16 %v230, %v226
    %v267 = vpack.c.b16 %v231, %v227
    %v268 = vpack.c.b16 %v236, %v232
    %v269 = vpack.c.b16 %v237, %v233
    %v270 = vpack.c.b16 %v238, %v234
    %v271 = vpack.c.b16 %v239, %v235
    %304 = vmatpush.bf16.msra.mxu0 %v268
    %305 = vmatpush.bf16.msra.mxu0 %v264
    %306 = vmatpush.bf16.msra.mxu0 %v260
    %307 = vmatpush.bf16.msra.mxu0 %v256
    %308 = vmatpush.bf16.msra.mxu0 %v252
    %309 = vmatpush.bf16.msra.mxu0 %v248
    %310 = vmatpush.bf16.msra.mxu0 %v244
    %311 = vmatpush.bf16.msra.mxu0 %v240
    %312 = vmatmul.bf16.gmra.mxu0 %v101
    %v313 = vpop.f32.mrf.mxu0
    %v314 = vadd.f32 %v136, %v313
    %v315 = vpop.f32.mrf.mxu0
    %316 = vdwg.mxu0
    %317 = vmatpush.bf16.msra.mxu0 %v269
    %318 = vmatpush.bf16.msra.mxu0 %v265
    %319 = vmatpush.bf16.msra.mxu0 %v261
    %320 = vmatpush.bf16.msra.mxu0 %v257
    %321 = vmatpush.bf16.msra.mxu0 %v253
    %322 = vmatpush.bf16.msra.mxu0 %v249
    %323 = vmatpush.bf16.msra.mxu0 %v245
    %324 = vmatpush.bf16.msra.mxu0 %v241
    %325 = vmatmul.bf16.gmra.mxu0 %v101
    %v326 = vpop.f32.mrf.mxu0
    %v327 = vadd.f32 %v137, %v326
    %v328 = vpop.f32.mrf.mxu0
    %329 = vdwg.mxu0
    %330 = vmatpush.bf16.msra.mxu0 %v270
    %331 = vmatpush.bf16.msra.mxu0 %v266
    %332 = vmatpush.bf16.msra.mxu0 %v262
    %333 = vmatpush.bf16.msra.mxu0 %v258
    %334 = vmatpush.bf16.msra.mxu0 %v254
    %335 = vmatpush.bf16.msra.mxu0 %v250
    %336 = vmatpush.bf16.msra.mxu0 %v246
    %337 = vmatpush.bf16.msra.mxu0 %v242
    %338 = vmatmul.bf16.gmra.mxu0 %v101
    %v339 = vpop.f32.mrf.mxu0
    %v340 = vadd.f32 %v138, %v339
    %v341 = vpop.f32.mrf.mxu0
    %342 = vdwg.mxu0
    %343 = vmatpush.bf16.msra.mxu0 %v271
    %344 = vmatpush.bf16.msra.mxu0 %v267
    %345 = vmatpush.bf16.msra.mxu0 %v263
    %346 = vmatpush.bf16.msra.mxu0 %v259
    %347 = vmatpush.bf16.msra.mxu0 %v255
    %348 = vmatpush.bf16.msra.mxu0 %v251
    %349 = vmatpush.bf16.msra.mxu0 %v247
    %350 = vmatpush.bf16.msra.mxu0 %v243
    %351 = vmatmul.bf16.gmra.mxu0 %v101
    %v352 = vpop.f32.mrf.mxu0
    %v353 = vadd.f32 %v139, %v352
    %v354 = vpop.f32.mrf.mxu0
    %355 = vdwg.mxu0
    %v356 = vmax.f32 %v314, 0.0
    %v357 = vmax.f32 %v327, 0.0
    %v358 = vmax.f32 %v340, 0.0
    %v359 = vmax.f32 %v353, 0.0
    %v360 = vpack.c.bf16 %v356, %v356
    %v361 = vpack.c.bf16 %v357, %v357
    %v362 = vpack.c.bf16 %v358, %v358
    %v363 = vpack.c.bf16 %v359, %v359
    %v364 = vld [vmem:[#allocation8] sm:$0xff]
    %v365 = vld [vmem:[#allocation8 + $0x8] sm:$0xf]
    %v366 = vld [vmem:[#allocation8 + $0xc] sm:$0xff]
    %v367 = vld [vmem:[#allocation8 + $0x14] sm:$0xf]
    %v368 = vld [vmem:[#allocation8 + $0x18] sm:$0xff]
    %v369 = vld [vmem:[#allocation8 + $0x20] sm:$0xf]
    %v370 = vld [vmem:[#allocation8 + $0x24] sm:$0xff]
    %v371 = vld [vmem:[#allocation8 + $0x2c] sm:$0xf]
    %v372 = vld [vmem:[#allocation8 + $0x30] sm:$0xff]
    %v373 = vld [vmem:[#allocation8 + $0x38] sm:$0xf]
    %v374 = vld [vmem:[#allocation8 + $0x3c] sm:$0xff]
    %v375 = vld [vmem:[#allocation8 + $0x44] sm:$0xf]
    %v376 = vld [vmem:[#allocation8 + $0x48] sm:$0xff]
    %v377 = vld [vmem:[#allocation8 + $0x50] sm:$0xf]
    %v378 = vld [vmem:[#allocation8 + $0x54] sm:$0xff]
    %v379 = vld [vmem:[#allocation8 + $0x5c] sm:$0xf]
    %v380 = vld [vmem:[#allocation8 + $0x60] sm:$0xff]
    %v381 = vld [vmem:[#allocation8 + $0x68] sm:$0xf]
    %v382 = vld [vmem:[#allocation8 + $0x6c] sm:$0xff]
    %v383 = vld [vmem:[#allocation8 + $0x74] sm:$0xf]
    %v384 = vld [vmem:[#allocation8 + $0x78] sm:$0xff]
    %v385 = vld [vmem:[#allocation8 + $0x80] sm:$0xf]
    %v386 = vld [vmem:[#allocation8 + $0x84] sm:$0xff]
    %v387 = vld [vmem:[#allocation8 + $0x8c] sm:$0xf]
    %v388 = vld [vmem:[#allocation8 + $0x90] sm:$0xff]
    %v389 = vld [vmem:[#allocation8 + $0x98] sm:$0xf]
    %v390 = vld [vmem:[#allocation8 + $0x9c] sm:$0xff]
    %v391 = vld [vmem:[#allocation8 + $0xa4] sm:$0xf]
    %v392 = vld [vmem:[#allocation8 + $0xa8] sm:$0xff]
    %v393 = vld [vmem:[#allocation8 + $0xb0] sm:$0xf]
    %v394 = vld [vmem:[#allocation8 + $0xb4] sm:$0xff]
    %v395 = vld [vmem:[#allocation8 + $0xbc] sm:$0xf]
    %v396 = vld [vmem:[#allocation8 + $0xc0] sm:$0xff]
    %v397 = vld [vmem:[#allocation8 + $0xc8] sm:$0xf]
    %v398 = vld [vmem:[#allocation8 + $0xcc] sm:$0xff]
    %v399 = vld [vmem:[#allocation8 + $0xd4] sm:$0xf]
    %v400 = vld [vmem:[#allocation8 + $0xd8] sm:$0xff]
    %v401 = vld [vmem:[#allocation8 + $0xe0] sm:$0xf]
    %v402 = vld [vmem:[#allocation8 + $0xe4] sm:$0xff]
    %v403 = vld [vmem:[#allocation8 + $0xec] sm:$0xf]
    %v404 = vld [vmem:[#allocation8 + $0xf0] sm:$0xff]
    %v405 = vld [vmem:[#allocation8 + $0xf8] sm:$0xf]
    %v406 = vld [vmem:[#allocation8 + $0xfc] sm:$0xff]
    %v407 = vld [vmem:[#allocation8 + $0x104] sm:$0xf]
    %v408 = vld [vmem:[#allocation8 + $0x108] sm:$0xff]
    %v409 = vld [vmem:[#allocation8 + $0x110] sm:$0xf]
    %v410 = vld [vmem:[#allocation8 + $0x114] sm:$0xff]
    %v411 = vld [vmem:[#allocation8 + $0x11c] sm:$0xf]
    %v412 = vld [vmem:[#allocation8 + $0x120] sm:$0xff]
    %v413 = vld [vmem:[#allocation8 + $0x128] sm:$0xf]
    %v414 = vld [vmem:[#allocation8 + $0x12c] sm:$0xff]
    %v415 = vld [vmem:[#allocation8 + $0x134] sm:$0xf]
    %v416 = vld [vmem:[#allocation8 + $0x138] sm:$0xff]
    %v417 = vld [vmem:[#allocation8 + $0x140] sm:$0xf]
    %v418 = vld [vmem:[#allocation8 + $0x144] sm:$0xff]
    %v419 = vld [vmem:[#allocation8 + $0x14c] sm:$0xf]
    %v420 = vld [vmem:[#allocation8 + $0x150] sm:$0xff]
    %v421 = vld [vmem:[#allocation8 + $0x158] sm:$0xf]
    %v422 = vld [vmem:[#allocation8 + $0x15c] sm:$0xff]
    %v423 = vld [vmem:[#allocation8 + $0x164] sm:$0xf]
    %v424 = vld [vmem:[#allocation8 + $0x168] sm:$0xff]
    %v425 = vld [vmem:[#allocation8 + $0x170] sm:$0xf]
    %v426 = vld [vmem:[#allocation8 + $0x174] sm:$0xff]
    %v427 = vld [vmem:[#allocation8 + $0x17c] sm:$0xf]
    %v428 = vld [vmem:[#allocation8 + $0x180] sm:$0xff]
    %v429 = vld [vmem:[#allocation8 + $0x188] sm:$0xf]
    %v430 = vld [vmem:[#allocation8 + $0x18c] sm:$0xff]
    %v431 = vld [vmem:[#allocation8 + $0x194] sm:$0xf]
    %v432 = vld [vmem:[#allocation8 + $0x198] sm:$0xff]
    %v433 = vld [vmem:[#allocation8 + $0x1a0] sm:$0xf]
    %v434 = vld [vmem:[#allocation8 + $0x1a4] sm:$0xff]
    %v435 = vld [vmem:[#allocation8 + $0x1ac] sm:$0xf]
    %v436 = vld [vmem:[#allocation8 + $0x1b0] sm:$0xff]
    %v437 = vld [vmem:[#allocation8 + $0x1b8] sm:$0xf]
    %v438 = vld [vmem:[#allocation8 + $0x1bc] sm:$0xff]
    %v439 = vld [vmem:[#allocation8 + $0x1c4] sm:$0xf]
    %v440 = vld [vmem:[#allocation8 + $0x1c8] sm:$0xff]
    %v441 = vld [vmem:[#allocation8 + $0x1d0] sm:$0xf]
    %v442 = vld [vmem:[#allocation8 + $0x1d4] sm:$0xff]
    %v443 = vld [vmem:[#allocation8 + $0x1dc] sm:$0xf]
    %v444 = vld [vmem:[#allocation8 + $0x1e0] sm:$0xff]
    %v445 = vld [vmem:[#allocation8 + $0x1e8] sm:$0xf]
    %v446 = vld [vmem:[#allocation8 + $0x1ec] sm:$0xff]
    %v447 = vld [vmem:[#allocation8 + $0x1f4] sm:$0xf]
    %v448 = vld [vmem:[#allocation8 + $0x1f8] sm:$0xff]
    %v449 = vld [vmem:[#allocation8 + $0x200] sm:$0xf]
    %v450 = vld [vmem:[#allocation8 + $0x204] sm:$0xff]
    %v451 = vld [vmem:[#allocation8 + $0x20c] sm:$0xf]
    %v452 = vld [vmem:[#allocation8 + $0x210] sm:$0xff]
    %v453 = vld [vmem:[#allocation8 + $0x218] sm:$0xf]
    %v454 = vld [vmem:[#allocation8 + $0x21c] sm:$0xff]
    %v455 = vld [vmem:[#allocation8 + $0x224] sm:$0xf]
    %v456 = vld [vmem:[#allocation8 + $0x228] sm:$0xff]
    %v457 = vld [vmem:[#allocation8 + $0x230] sm:$0xf]
    %v458 = vld [vmem:[#allocation8 + $0x234] sm:$0xff]
    %v459 = vld [vmem:[#allocation8 + $0x23c] sm:$0xf]
    %v460 = vld [vmem:[#allocation8 + $0x240] sm:$0xff]
    %v461 = vld [vmem:[#allocation8 + $0x248] sm:$0xf]
    %v462 = vld [vmem:[#allocation8 + $0x24c] sm:$0xff]
    %v463 = vld [vmem:[#allocation8 + $0x254] sm:$0xf]
    %v464 = vld [vmem:[#allocation8 + $0x258] sm:$0xff]
    %v465 = vld [vmem:[#allocation8 + $0x260] sm:$0xf]
    %v466 = vld [vmem:[#allocation8 + $0x264] sm:$0xff]
    %v467 = vld [vmem:[#allocation8 + $0x26c] sm:$0xf]
    %v468 = vld [vmem:[#allocation8 + $0x270] sm:$0xff]
    %v469 = vld [vmem:[#allocation8 + $0x278] sm:$0xf]
    %v470 = vld [vmem:[#allocation8 + $0x27c] sm:$0xff]
    %v471 = vld [vmem:[#allocation8 + $0x284] sm:$0xf]
    %v472 = vld [vmem:[#allocation8 + $0x288] sm:$0xff]
    %v473 = vld [vmem:[#allocation8 + $0x290] sm:$0xf]
    %v474 = vld [vmem:[#allocation8 + $0x294] sm:$0xff]
    %v475 = vld [vmem:[#allocation8 + $0x29c] sm:$0xf]
    %v476 = vld [vmem:[#allocation8 + $0x2a0] sm:$0xff]
    %v477 = vld [vmem:[#allocation8 + $0x2a8] sm:$0xf]
    %v478 = vld [vmem:[#allocation8 + $0x2ac] sm:$0xff]
    %v479 = vld [vmem:[#allocation8 + $0x2b4] sm:$0xf]
    %v480 = vld [vmem:[#allocation8 + $0x2b8] sm:$0xff]
    %v481 = vld [vmem:[#allocation8 + $0x2c0] sm:$0xf]
    %v482 = vld [vmem:[#allocation8 + $0x2c4] sm:$0xff]
    %v483 = vld [vmem:[#allocation8 + $0x2cc] sm:$0xf]
    %v484 = vld [vmem:[#allocation8 + $0x2d0] sm:$0xff]
    %v485 = vld [vmem:[#allocation8 + $0x2d8] sm:$0xf]
    %v486 = vld [vmem:[#allocation8 + $0x2dc] sm:$0xff]
    %v487 = vld [vmem:[#allocation8 + $0x2e4] sm:$0xf]
    %v488 = vld [vmem:[#allocation8 + $0x2e8] sm:$0xff]
    %v489 = vld [vmem:[#allocation8 + $0x2f0] sm:$0xf]
    %v490 = vld [vmem:[#allocation8 + $0x2f4] sm:$0xff]
    %v491 = vld [vmem:[#allocation8 + $0x2fc] sm:$0xf]
    %v492 = vld [vmem:[%s4] sm:$0x7]
    %v494 = vperm.slane %v492, 0
    %v495 = vperm.slane %v492, 1
    %v496 = vperm.slane %v492, 2
    %v628 = vunpack.c.l.b16 %v364
    %v629 = vunpack.c.h.b16 %v364
    %v630 = vunpack.c.l.b16 %v365
    %v631 = vunpack.c.l.b16 %v366
    %v632 = vunpack.c.h.b16 %v366
    %v633 = vunpack.c.l.b16 %v367
    %v634 = vunpack.c.l.b16 %v368
    %v635 = vunpack.c.h.b16 %v368
    %v636 = vunpack.c.l.b16 %v369
    %v637 = vunpack.c.l.b16 %v370
    %v638 = vunpack.c.h.b16 %v370
    %v639 = vunpack.c.l.b16 %v371
    %v640 = vunpack.c.l.b16 %v372
    %v641 = vunpack.c.h.b16 %v372
    %v642 = vunpack.c.l.b16 %v373
    %v643 = vunpack.c.l.b16 %v374
    %v644 = vunpack.c.h.b16 %v374
    %v645 = vunpack.c.l.b16 %v375
    %v646 = vunpack.c.l.b16 %v376
    %v647 = vunpack.c.h.b16 %v376
    %v648 = vunpack.c.l.b16 %v377
    %v649 = vunpack.c.l.b16 %v378
    %v650 = vunpack.c.h.b16 %v378
    %v651 = vunpack.c.l.b16 %v379
    %v652 = vunpack.c.l.b16 %v380
    %v653 = vunpack.c.h.b16 %v380
    %v654 = vunpack.c.l.b16 %v381
    %v655 = vunpack.c.l.b16 %v382
    %v656 = vunpack.c.h.b16 %v382
    %v657 = vunpack.c.l.b16 %v383
    %v658 = vunpack.c.l.b16 %v384
    %v659 = vunpack.c.h.b16 %v384
    %v660 = vunpack.c.l.b16 %v385
    %v661 = vunpack.c.l.b16 %v386
    %v662 = vunpack.c.h.b16 %v386
    %v663 = vunpack.c.l.b16 %v387
    %v664 = vunpack.c.l.b16 %v388
    %v665 = vunpack.c.h.b16 %v388
    %v666 = vunpack.c.l.b16 %v389
    %v667 = vunpack.c.l.b16 %v390
    %v668 = vunpack.c.h.b16 %v390
    %v669 = vunpack.c.l.b16 %v391
    %v670 = vunpack.c.l.b16 %v392
    %v671 = vunpack.c.h.b16 %v392
    %v672 = vunpack.c.l.b16 %v393
    %v673 = vunpack.c.l.b16 %v394
    %v674 = vunpack.c.h.b16 %v394
    %v675 = vunpack.c.l.b16 %v395
    %v676 = vunpack.c.l.b16 %v396
    %v677 = vunpack.c.h.b16 %v396
    %v678 = vunpack.c.l.b16 %v397
    %v679 = vunpack.c.l.b16 %v398
    %v680 = vunpack.c.h.b16 %v398
    %v681 = vunpack.c.l.b16 %v399
    %v682 = vunpack.c.l.b16 %v400
    %v683 = vunpack.c.h.b16 %v400
    %v684 = vunpack.c.l.b16 %v401
    %v685 = vunpack.c.l.b16 %v402
    %v686 = vunpack.c.h.b16 %v402
    %v687 = vunpack.c.l.b16 %v403
    %v688 = vunpack.c.l.b16 %v404
    %v689 = vunpack.c.h.b16 %v404
    %v690 = vunpack.c.l.b16 %v405
    %v691 = vunpack.c.l.b16 %v406
    %v692 = vunpack.c.h.b16 %v406
    %v693 = vunpack.c.l.b16 %v407
    %v694 = vunpack.c.l.b16 %v408
    %v695 = vunpack.c.h.b16 %v408
    %v696 = vunpack.c.l.b16 %v409
    %v697 = vunpack.c.l.b16 %v410
    %v698 = vunpack.c.h.b16 %v410
    %v699 = vunpack.c.l.b16 %v411
    %v700 = vunpack.c.l.b16 %v412
    %v701 = vunpack.c.h.b16 %v412
    %v702 = vunpack.c.l.b16 %v413
    %v703 = vunpack.c.l.b16 %v414
    %v704 = vunpack.c.h.b16 %v414
    %v705 = vunpack.c.l.b16 %v415
    %v706 = vunpack.c.l.b16 %v416
    %v707 = vunpack.c.h.b16 %v416
    %v708 = vunpack.c.l.b16 %v417
    %v709 = vunpack.c.l.b16 %v418
    %v710 = vunpack.c.h.b16 %v418
    %v711 = vunpack.c.l.b16 %v419
    %v712 = vunpack.c.l.b16 %v420
    %v713 = vunpack.c.h.b16 %v420
    %v714 = vunpack.c.l.b16 %v421
    %v715 = vunpack.c.l.b16 %v422
    %v716 = vunpack.c.h.b16 %v422
    %v717 = vunpack.c.l.b16 %v423
    %v718 = vunpack.c.l.b16 %v424
    %v719 = vunpack.c.h.b16 %v424
    %v720 = vunpack.c.l.b16 %v425
    %v721 = vunpack.c.l.b16 %v426
    %v722 = vunpack.c.h.b16 %v426
    %v723 = vunpack.c.l.b16 %v427
    %v724 = vunpack.c.l.b16 %v428
    %v725 = vunpack.c.h.b16 %v428
    %v726 = vunpack.c.l.b16 %v429
    %v727 = vunpack.c.l.b16 %v430
    %v728 = vunpack.c.h.b16 %v430
    %v729 = vunpack.c.l.b16 %v431
    %v730 = vunpack.c.l.b16 %v432
    %v731 = vunpack.c.h.b16 %v432
    %v732 = vunpack.c.l.b16 %v433
    %v733 = vunpack.c.l.b16 %v434
    %v734 = vunpack.c.h.b16 %v434
    %v735 = vunpack.c.l.b16 %v435
    %v736 = vunpack.c.l.b16 %v436
    %v737 = vunpack.c.h.b16 %v436
    %v738 = vunpack.c.l.b16 %v437
    %v739 = vunpack.c.l.b16 %v438
    %v740 = vunpack.c.h.b16 %v438
    %v741 = vunpack.c.l.b16 %v439
    %v742 = vunpack.c.l.b16 %v440
    %v743 = vunpack.c.h.b16 %v440
    %v744 = vunpack.c.l.b16 %v441
    %v745 = vunpack.c.l.b16 %v442
    %v746 = vunpack.c.h.b16 %v442
    %v747 = vunpack.c.l.b16 %v443
    %v748 = vunpack.c.l.b16 %v444
    %v749 = vunpack.c.h.b16 %v444
    %v750 = vunpack.c.l.b16 %v445
    %v751 = vunpack.c.l.b16 %v446
    %v752 = vunpack.c.h.b16 %v446
    %v753 = vunpack.c.l.b16 %v447
    %v754 = vunpack.c.l.b16 %v448
    %v755 = vunpack.c.h.b16 %v448
    %v756 = vunpack.c.l.b16 %v449
    %v757 = vunpack.c.l.b16 %v450
    %v758 = vunpack.c.h.b16 %v450
    %v759 = vunpack.c.l.b16 %v451
    %v760 = vunpack.c.l.b16 %v452
    %v761 = vunpack.c.h.b16 %v452
    %v762 = vunpack.c.l.b16 %v453
    %v763 = vunpack.c.l.b16 %v454
    %v764 = vunpack.c.h.b16 %v454
    %v765 = vunpack.c.l.b16 %v455
    %v766 = vunpack.c.l.b16 %v456
    %v767 = vunpack.c.h.b16 %v456
    %v768 = vunpack.c.l.b16 %v457
    %v769 = vunpack.c.l.b16 %v458
    %v770 = vunpack.c.h.b16 %v458
    %v771 = vunpack.c.l.b16 %v459
    %v772 = vunpack.c.l.b16 %v460
    %v773 = vunpack.c.h.b16 %v460
    %v774 = vunpack.c.l.b16 %v461
    %v775 = vunpack.c.l.b16 %v462
    %v776 = vunpack.c.h.b16 %v462
    %v777 = vunpack.c.l.b16 %v463
    %v778 = vunpack.c.l.b16 %v464
    %v779 = vunpack.c.h.b16 %v464
    %v780 = vunpack.c.l.b16 %v465
    %v781 = vunpack.c.l.b16 %v466
    %v782 = vunpack.c.h.b16 %v466
    %v783 = vunpack.c.l.b16 %v467
    %v784 = vunpack.c.l.b16 %v468
    %v785 = vunpack.c.h.b16 %v468
    %v786 = vunpack.c.l.b16 %v469
    %v787 = vunpack.c.l.b16 %v470
    %v788 = vunpack.c.h.b16 %v470
    %v789 = vunpack.c.l.b16 %v471
    %v790 = vunpack.c.l.b16 %v472
    %v791 = vunpack.c.h.b16 %v472
    %v792 = vunpack.c.l.b16 %v473
    %v793 = vunpack.c.l.b16 %v474
    %v794 = vunpack.c.h.b16 %v474
    %v795 = vunpack.c.l.b16 %v475
    %v796 = vunpack.c.l.b16 %v476
    %v797 = vunpack.c.h.b16 %v476
    %v798 = vunpack.c.l.b16 %v477
    %v799 = vunpack.c.l.b16 %v478
    %v800 = vunpack.c.h.b16 %v478
    %v801 = vunpack.c.l.b16 %v479
    %v802 = vunpack.c.l.b16 %v480
    %v803 = vunpack.c.h.b16 %v480
    %v804 = vunpack.c.l.b16 %v481
    %v805 = vunpack.c.l.b16 %v482
    %v806 = vunpack.c.h.b16 %v482
    %v807 = vunpack.c.l.b16 %v483
    %v808 = vunpack.c.l.b16 %v484
    %v809 = vunpack.c.h.b16 %v484
    %v810 = vunpack.c.l.b16 %v485
    %v811 = vunpack.c.l.b16 %v486
    %v812 = vunpack.c.h.b16 %v486
    %v813 = vunpack.c.l.b16 %v487
    %v814 = vunpack.c.l.b16 %v488
    %v815 = vunpack.c.h.b16 %v488
    %v816 = vunpack.c.l.b16 %v489
    %v817 = vunpack.c.l.b16 %v490
    %v818 = vunpack.c.h.b16 %v490
    %v819 = vunpack.c.l.b16 %v491
    %v820 = vpack.c.b16 %v631, %v628
    %v821 = vpack.c.b16 %v632, %v629
    %v822 = vpack.c.b16 %v633, %v630
    %v823 = vpack.c.b16 %v637, %v634
    %v824 = vpack.c.b16 %v638, %v635
    %v825 = vpack.c.b16 %v639, %v636
    %v826 = vpack.c.b16 %v643, %v640
    %v827 = vpack.c.b16 %v644, %v641
    %v828 = vpack.c.b16 %v645, %v642
    %v829 = vpack.c.b16 %v649, %v646
    %v830 = vpack.c.b16 %v650, %v647
    %v831 = vpack.c.b16 %v651, %v648
    %v832 = vpack.c.b16 %v655, %v652
    %v833 = vpack.c.b16 %v656, %v653
    %v834 = vpack.c.b16 %v657, %v654
    %v835 = vpack.c.b16 %v661, %v658
    %v836 = vpack.c.b16 %v662, %v659
    %v837 = vpack.c.b16 %v663, %v660
    %v838 = vpack.c.b16 %v667, %v664
    %v839 = vpack.c.b16 %v668, %v665
    %v840 = vpack.c.b16 %v669, %v666
    %v841 = vpack.c.b16 %v673, %v670
    %v842 = vpack.c.b16 %v674, %v671
    %v843 = vpack.c.b16 %v675, %v672
    %v844 = vpack.c.b16 %v679, %v676
    %v845 = vpack.c.b16 %v680, %v677
    %v846 = vpack.c.b16 %v681, %v678
    %v847 = vpack.c.b16 %v685, %v682
    %v848 = vpack.c.b16 %v686, %v683
    %v849 = vpack.c.b16 %v687, %v684
    %v850 = vpack.c.b16 %v691, %v688
    %v851 = vpack.c.b16 %v692, %v689
    %v852 = vpack.c.b16 %v693, %v690
    %v853 = vpack.c.b16 %v697, %v694
    %v854 = vpack.c.b16 %v698, %v695
    %v855 = vpack.c.b16 %v699, %v696
    %v856 = vpack.c.b16 %v703, %v700
    %v857 = vpack.c.b16 %v704, %v701
    %v858 = vpack.c.b16 %v705, %v702
    %v859 = vpack.c.b16 %v709, %v706
    %v860 = vpack.c.b16 %v710, %v707
    %v861 = vpack.c.b16 %v711, %v708
    %v862 = vpack.c.b16 %v715, %v712
    %v863 = vpack.c.b16 %v716, %v713
    %v864 = vpack.c.b16 %v717, %v714
    %v865 = vpack.c.b16 %v721, %v718
    %v866 = vpack.c.b16 %v722, %v719
    %v867 = vpack.c.b16 %v723, %v720
    %v868 = vpack.c.b16 %v727, %v724
    %v869 = vpack.c.b16 %v728, %v725
    %v870 = vpack.c.b16 %v729, %v726
    %v871 = vpack.c.b16 %v733, %v730
    %v872 = vpack.c.b16 %v734, %v731
    %v873 = vpack.c.b16 %v735, %v732
    %v874 = vpack.c.b16 %v739, %v736
    %v875 = vpack.c.b16 %v740, %v737
    %v876 = vpack.c.b16 %v741, %v738
    %v877 = vpack.c.b16 %v745, %v742
    %v878 = vpack.c.b16 %v746, %v743
    %v879 = vpack.c.b16 %v747, %v744
    %v880 = vpack.c.b16 %v751, %v748
    %v881 = vpack.c.b16 %v752, %v749
    %v882 = vpack.c.b16 %v753, %v750
    %v883 = vpack.c.b16 %v757, %v754
    %v884 = vpack.c.b16 %v758, %v755
    %v885 = vpack.c.b16 %v759, %v756
    %v886 = vpack.c.b16 %v763, %v760
    %v887 = vpack.c.b16 %v764, %v761
    %v888 = vpack.c.b16 %v765, %v762
    %v889 = vpack.c.b16 %v769, %v766
    %v890 = vpack.c.b16 %v770, %v767
    %v891 = vpack.c.b16 %v771, %v768
    %v892 = vpack.c.b16 %v775, %v772
    %v893 = vpack.c.b16 %v776, %v773
    %v894 = vpack.c.b16 %v777, %v774
    %v895 = vpack.c.b16 %v781, %v778
    %v896 = vpack.c.b16 %v782, %v779
    %v897 = vpack.c.b16 %v783, %v780
    %v898 = vpack.c.b16 %v787, %v784
    %v899 = vpack.c.b16 %v788, %v785
    %v900 = vpack.c.b16 %v789, %v786
    %v901 = vpack.c.b16 %v793, %v790
    %v902 = vpack.c.b16 %v794, %v791
    %v903 = vpack.c.b16 %v795, %v792
    %v904 = vpack.c.b16 %v799, %v796
    %v905 = vpack.c.b16 %v800, %v797
    %v906 = vpack.c.b16 %v801, %v798
    %v907 = vpack.c.b16 %v805, %v802
    %v908 = vpack.c.b16 %v806, %v803
    %v909 = vpack.c.b16 %v807, %v804
    %v910 = vpack.c.b16 %v811, %v808
    %v911 = vpack.c.b16 %v812, %v809
    %v912 = vpack.c.b16 %v813, %v810
    %v913 = vpack.c.b16 %v817, %v814
    %v914 = vpack.c.b16 %v818, %v815
    %v915 = vpack.c.b16 %v819, %v816
    %1012 = vmatpush.bf16.msra.mxu0 %v841
    %1013 = vmatpush.bf16.msra.mxu0 %v838
    %1014 = vmatpush.bf16.msra.mxu0 %v835
    %1015 = vmatpush.bf16.msra.mxu0 %v832
    %1016 = vmatpush.bf16.msra.mxu0 %v829
    %1017 = vmatpush.bf16.msra.mxu0 %v826
    %1018 = vmatpush.bf16.msra.mxu0 %v823
    %1019 = vmatpush.bf16.msra.mxu0 %v820
    %1020 = vmatmul.bf16.gmra.mxu0 %v360
    %v1021 = vpop.f32.mrf.mxu0
    %v1022 = vadd.f32 %v494, %v1021
    %v1023 = vpop.f32.mrf.mxu0
    %1024 = vdwg.mxu0
    %1025 = vmatpush.bf16.msra.mxu0 %v865
    %1026 = vmatpush.bf16.msra.mxu0 %v862
    %1027 = vmatpush.bf16.msra.mxu0 %v859
    %1028 = vmatpush.bf16.msra.mxu0 %v856
    %1029 = vmatpush.bf16.msra.mxu0 %v853
    %1030 = vmatpush.bf16.msra.mxu0 %v850
    %1031 = vmatpush.bf16.msra.mxu0 %v847
    %1032 = vmatpush.bf16.msra.mxu0 %v844
    %1033 = vmatmul.bf16.gmra.mxu0 %v361
    %v1034 = vpop.f32.mrf.mxu0
    %v1035 = vadd.f32 %v1022, %v1034
    %v1036 = vpop.f32.mrf.mxu0
    %1037 = vdwg.mxu0
    %1038 = vmatpush.bf16.msra.mxu0 %v889
    %1039 = vmatpush.bf16.msra.mxu0 %v886
    %1040 = vmatpush.bf16.msra.mxu0 %v883
    %1041 = vmatpush.bf16.msra.mxu0 %v880
    %1042 = vmatpush.bf16.msra.mxu0 %v877
    %1043 = vmatpush.bf16.msra.mxu0 %v874
    %1044 = vmatpush.bf16.msra.mxu0 %v871
    %1045 = vmatpush.bf16.msra.mxu0 %v868
    %1046 = vmatmul.bf16.gmra.mxu0 %v362
    %v1047 = vpop.f32.mrf.mxu0
    %v1048 = vadd.f32 %v1035, %v1047
    %v1049 = vpop.f32.mrf.mxu0
    %1050 = vdwg.mxu0
    %1051 = vmatpush.bf16.msra.mxu0 %v913
    %1052 = vmatpush.bf16.msra.mxu0 %v910
    %1053 = vmatpush.bf16.msra.mxu0 %v907
    %1054 = vmatpush.bf16.msra.mxu0 %v904
    %1055 = vmatpush.bf16.msra.mxu0 %v901
    %1056 = vmatpush.bf16.msra.mxu0 %v898
    %1057 = vmatpush.bf16.msra.mxu0 %v895
    %1058 = vmatpush.bf16.msra.mxu0 %v892
    %1059 = vmatmul.bf16.gmra.mxu0 %v363
    %v1060 = vpop.f32.mrf.mxu0
    %v1061 = vadd.f32 %v1048, %v1060
    %v1062 = vpop.f32.mrf.mxu0
    %1063 = vdwg.mxu0
    %1064 = vmatpush.bf16.msra.mxu0 %v842
    %1065 = vmatpush.bf16.msra.mxu0 %v839
    %1066 = vmatpush.bf16.msra.mxu0 %v836
    %1067 = vmatpush.bf16.msra.mxu0 %v833
    %1068 = vmatpush.bf16.msra.mxu0 %v830
    %1069 = vmatpush.bf16.msra.mxu0 %v827
    %1070 = vmatpush.bf16.msra.mxu0 %v824
    %1071 = vmatpush.bf16.msra.mxu0 %v821
    %1072 = vmatmul.bf16.gmra.mxu0 %v360
    %v1073 = vpop.f32.mrf.mxu0
    %v1074 = vadd.f32 %v495, %v1073
    %v1075 = vpop.f32.mrf.mxu0
    %1076 = vdwg.mxu0
    %1077 = vmatpush.bf16.msra.mxu0 %v866
    %1078 = vmatpush.bf16.msra.mxu0 %v863
    %1079 = vmatpush.bf16.msra.mxu0 %v860
    %1080 = vmatpush.bf16.msra.mxu0 %v857
    %1081 = vmatpush.bf16.msra.mxu0 %v854
    %1082 = vmatpush.bf16.msra.mxu0 %v851
    %1083 = vmatpush.bf16.msra.mxu0 %v848
    %1084 = vmatpush.bf16.msra.mxu0 %v845
    %1085 = vmatmul.bf16.gmra.mxu0 %v361
    %v1086 = vpop.f32.mrf.mxu0
    %v1087 = vadd.f32 %v1074, %v1086
    %v1088 = vpop.f32.mrf.mxu0
    %1089 = vdwg.mxu0
    %1090 = vmatpush.bf16.msra.mxu0 %v890
    %1091 = vmatpush.bf16.msra.mxu0 %v887
    %1092 = vmatpush.bf16.msra.mxu0 %v884
    %1093 = vmatpush.bf16.msra.mxu0 %v881
    %1094 = vmatpush.bf16.msra.mxu0 %v878
    %1095 = vmatpush.bf16.msra.mxu0 %v875
    %1096 = vmatpush.bf16.msra.mxu0 %v872
    %1097 = vmatpush.bf16.msra.mxu0 %v869
    %1098 = vmatmul.bf16.gmra.mxu0 %v362
    %v1099 = vpop.f32.mrf.mxu0
    %v1100 = vadd.f32 %v1087, %v1099
    %v1101 = vpop.f32.mrf.mxu0
    %1102 = vdwg.mxu0
    %1103 = vmatpush.bf16.msra.mxu0 %v914
    %1104 = vmatpush.bf16.msra.mxu0 %v911
    %1105 = vmatpush.bf16.msra.mxu0 %v908
    %1106 = vmatpush.bf16.msra.mxu0 %v905
    %1107 = vmatpush.bf16.msra.mxu0 %v902
    %1108 = vmatpush.bf16.msra.mxu0 %v899
    %1109 = vmatpush.bf16.msra.mxu0 %v896
    %1110 = vmatpush.bf16.msra.mxu0 %v893
    %1111 = vmatmul.bf16.gmra.mxu0 %v363
    %v1112 = vpop.f32.mrf.mxu0
    %v1113 = vadd.f32 %v1100, %v1112
    %v1114 = vpop.f32.mrf.mxu0
    %1115 = vdwg.mxu0
    %1116 = vmatpush.bf16.msra.mxu0 %v843
    %1117 = vmatpush.bf16.msra.mxu0 %v840
    %1118 = vmatpush.bf16.msra.mxu0 %v837
    %1119 = vmatpush.bf16.msra.mxu0 %v834
    %1120 = vmatpush.bf16.msra.mxu0 %v831
    %1121 = vmatpush.bf16.msra.mxu0 %v828
    %1122 = vmatpush.bf16.msra.mxu0 %v825
    %1123 = vmatpush.bf16.msra.mxu0 %v822
    %1124 = vmatmul.bf16.gmra.mxu0 %v360
    %v1125 = vpop.f32.mrf.mxu0
    %v1126 = vadd.f32 %v496, %v1125
    %v1127 = vpop.f32.mrf.mxu0
    %1128 = vdwg.mxu0
    %1129 = vmatpush.bf16.msra.mxu0 %v867
    %1130 = vmatpush.bf16.msra.mxu0 %v864
    %1131 = vmatpush.bf16.msra.mxu0 %v861
    %1132 = vmatpush.bf16.msra.mxu0 %v858
    %1133 = vmatpush.bf16.msra.mxu0 %v855
    %1134 = vmatpush.bf16.msra.mxu0 %v852
    %1135 = vmatpush.bf16.msra.mxu0 %v849
    %1136 = vmatpush.bf16.msra.mxu0 %v846
    %1137 = vmatmul.bf16.gmra.mxu0 %v361
    %v1138 = vpop.f32.mrf.mxu0
    %v1139 = vadd.f32 %v1126, %v1138
    %v1140 = vpop.f32.mrf.mxu0
    %1141 = vdwg.mxu0
    %1142 = vmatpush.bf16.msra.mxu0 %v891
    %1143 = vmatpush.bf16.msra.mxu0 %v888
    %1144 = vmatpush.bf16.msra.mxu0 %v885
    %1145 = vmatpush.bf16.msra.mxu0 %v882
    %1146 = vmatpush.bf16.msra.mxu0 %v879
    %1147 = vmatpush.bf16.msra.mxu0 %v876
    %1148 = vmatpush.bf16.msra.mxu0 %v873
    %1149 = vmatpush.bf16.msra.mxu0 %v870
    %1150 = vmatmul.bf16.gmra.mxu0 %v362
    %v1151 = vpop.f32.mrf.mxu0
    %v1152 = vadd.f32 %v1139, %v1151
    %v1153 = vpop.f32.mrf.mxu0
    %1154 = vdwg.mxu0
    %1155 = vmatpush.bf16.msra.mxu0 %v915
    %1156 = vmatpush.bf16.msra.mxu0 %v912
    %1157 = vmatpush.bf16.msra.mxu0 %v909
    %1158 = vmatpush.bf16.msra.mxu0 %v906
    %1159 = vmatpush.bf16.msra.mxu0 %v903
    %1160 = vmatpush.bf16.msra.mxu0 %v900
    %1161 = vmatpush.bf16.msra.mxu0 %v897
    %1162 = vmatpush.bf16.msra.mxu0 %v894
    %1163 = vmatmul.bf16.gmra.mxu0 %v363
    %v1164 = vpop.f32.mrf.mxu0
    %v1165 = vadd.f32 %v1152, %v1164
    %v1166 = vpop.f32.mrf.mxu0
    %1167 = vdwg.mxu0
    %v1168 = vmax.f32 %v1061, 0.0
    %v1169 = vmax.f32 %v1113, 0.0
    %v1170 = vmax.f32 %v1165, 0.0
    %v1171 = vpack.c.bf16 %v1168, %v1168
    %v1172 = vpack.c.bf16 %v1169, %v1169
    %v1173 = vpack.c.bf16 %v1170, %v1170
    %v1174 = vld [vmem:[#allocation10] sm:$0xf]
    %v1175 = vld [vmem:[#allocation10 + $0x4] sm:$0xf]
    %v1176 = vld [vmem:[#allocation10 + $0x8] sm:$0xf]
    %v1177 = vld [vmem:[#allocation10 + $0xc] sm:$0xf]
    %v1178 = vld [vmem:[#allocation10 + $0x10] sm:$0xf]
    %v1179 = vld [vmem:[#allocation10 + $0x14] sm:$0xf]
    %v1180 = vld [vmem:[#allocation10 + $0x18] sm:$0xf]
    %v1181 = vld [vmem:[#allocation10 + $0x1c] sm:$0xf]
    %v1182 = vld [vmem:[#allocation10 + $0x20] sm:$0xf]
    %v1183 = vld [vmem:[#allocation10 + $0x24] sm:$0xf]
    %v1184 = vld [vmem:[#allocation10 + $0x28] sm:$0xf]
    %v1185 = vld [vmem:[#allocation10 + $0x2c] sm:$0xf]
    %v1186 = vld [vmem:[#allocation10 + $0x30] sm:$0xf]
    %v1187 = vld [vmem:[#allocation10 + $0x34] sm:$0xf]
    %v1188 = vld [vmem:[#allocation10 + $0x38] sm:$0xf]
    %v1189 = vld [vmem:[#allocation10 + $0x3c] sm:$0xf]
    %v1190 = vld [vmem:[#allocation10 + $0x40] sm:$0xf]
    %v1191 = vld [vmem:[#allocation10 + $0x44] sm:$0xf]
    %v1192 = vld [vmem:[#allocation10 + $0x48] sm:$0xf]
    %v1193 = vld [vmem:[#allocation10 + $0x4c] sm:$0xf]
    %v1194 = vld [vmem:[#allocation10 + $0x50] sm:$0xf]
    %v1195 = vld [vmem:[#allocation10 + $0x54] sm:$0xf]
    %v1196 = vld [vmem:[#allocation10 + $0x58] sm:$0xf]
    %v1197 = vld [vmem:[#allocation10 + $0x5c] sm:$0xf]
    %v1198 = vld [vmem:[#allocation10 + $0x60] sm:$0xf]
    %v1199 = vld [vmem:[#allocation10 + $0x64] sm:$0xf]
    %v1200 = vld [vmem:[#allocation10 + $0x68] sm:$0xf]
    %v1201 = vld [vmem:[#allocation10 + $0x6c] sm:$0xf]
    %v1202 = vld [vmem:[#allocation10 + $0x70] sm:$0xf]
    %v1203 = vld [vmem:[#allocation10 + $0x74] sm:$0xf]
    %v1204 = vld [vmem:[#allocation10 + $0x78] sm:$0xf]
    %v1205 = vld [vmem:[#allocation10 + $0x7c] sm:$0xf]
    %v1206 = vld [vmem:[#allocation10 + $0x80] sm:$0xf]
    %v1207 = vld [vmem:[#allocation10 + $0x84] sm:$0xf]
    %v1208 = vld [vmem:[#allocation10 + $0x88] sm:$0xf]
    %v1209 = vld [vmem:[#allocation10 + $0x8c] sm:$0xf]
    %v1210 = vld [vmem:[#allocation10 + $0x90] sm:$0xf]
    %v1211 = vld [vmem:[#allocation10 + $0x94] sm:$0xf]
    %v1212 = vld [vmem:[#allocation10 + $0x98] sm:$0xf]
    %v1213 = vld [vmem:[#allocation10 + $0x9c] sm:$0xf]
    %v1214 = vld [vmem:[#allocation10 + $0xa0] sm:$0xf]
    %v1215 = vld [vmem:[#allocation10 + $0xa4] sm:$0xf]
    %v1216 = vld [vmem:[#allocation10 + $0xa8] sm:$0xf]
    %v1217 = vld [vmem:[#allocation10 + $0xac] sm:$0xf]
    %v1218 = vld [vmem:[#allocation10 + $0xb0] sm:$0xf]
    %v1219 = vld [vmem:[#allocation10 + $0xb4] sm:$0xf]
    %v1220 = vld [vmem:[#allocation10 + $0xb8] sm:$0xf]
    %v1221 = vld [vmem:[#allocation10 + $0xbc] sm:$0xf]
    %v1222 = vld [vmem:[%s6] sm:$0x1]
    %v1224 = vperm.slane %v1222, 0
    %v1274 = vunpack.c.l.b16 %v1174
    %v1275 = vunpack.c.l.b16 %v1175
    %v1276 = vunpack.c.l.b16 %v1176
    %v1277 = vunpack.c.l.b16 %v1177
    %v1278 = vunpack.c.l.b16 %v1178
    %v1279 = vunpack.c.l.b16 %v1179
    %v1280 = vunpack.c.l.b16 %v1180
    %v1281 = vunpack.c.l.b16 %v1181
    %v1282 = vunpack.c.l.b16 %v1182
    %v1283 = vunpack.c.l.b16 %v1183
    %v1284 = vunpack.c.l.b16 %v1184
    %v1285 = vunpack.c.l.b16 %v1185
    %v1286 = vunpack.c.l.b16 %v1186
    %v1287 = vunpack.c.l.b16 %v1187
    %v1288 = vunpack.c.l.b16 %v1188
    %v1289 = vunpack.c.l.b16 %v1189
    %v1290 = vunpack.c.l.b16 %v1190
    %v1291 = vunpack.c.l.b16 %v1191
    %v1292 = vunpack.c.l.b16 %v1192
    %v1293 = vunpack.c.l.b16 %v1193
    %v1294 = vunpack.c.l.b16 %v1194
    %v1295 = vunpack.c.l.b16 %v1195
    %v1296 = vunpack.c.l.b16 %v1196
    %v1297 = vunpack.c.l.b16 %v1197
    %v1298 = vunpack.c.l.b16 %v1198
    %v1299 = vunpack.c.l.b16 %v1199
    %v1300 = vunpack.c.l.b16 %v1200
    %v1301 = vunpack.c.l.b16 %v1201
    %v1302 = vunpack.c.l.b16 %v1202
    %v1303 = vunpack.c.l.b16 %v1203
    %v1304 = vunpack.c.l.b16 %v1204
    %v1305 = vunpack.c.l.b16 %v1205
    %v1306 = vunpack.c.l.b16 %v1206
    %v1307 = vunpack.c.l.b16 %v1207
    %v1308 = vunpack.c.l.b16 %v1208
    %v1309 = vunpack.c.l.b16 %v1209
    %v1310 = vunpack.c.l.b16 %v1210
    %v1311 = vunpack.c.l.b16 %v1211
    %v1312 = vunpack.c.l.b16 %v1212
    %v1313 = vunpack.c.l.b16 %v1213
    %v1314 = vunpack.c.l.b16 %v1214
    %v1315 = vunpack.c.l.b16 %v1215
    %v1316 = vunpack.c.l.b16 %v1216
    %v1317 = vunpack.c.l.b16 %v1217
    %v1318 = vunpack.c.l.b16 %v1218
    %v1319 = vunpack.c.l.b16 %v1219
    %v1320 = vunpack.c.l.b16 %v1220
    %v1321 = vunpack.c.l.b16 %v1221
    %v1322 = vpack.c.b16 %v1275, %v1274
    %v1323 = vpack.c.b16 %v1277, %v1276
    %v1324 = vpack.c.b16 %v1279, %v1278
    %v1325 = vpack.c.b16 %v1281, %v1280
    %v1326 = vpack.c.b16 %v1283, %v1282
    %v1327 = vpack.c.b16 %v1285, %v1284
    %v1328 = vpack.c.b16 %v1287, %v1286
    %v1329 = vpack.c.b16 %v1289, %v1288
    %v1330 = vpack.c.b16 %v1291, %v1290
    %v1331 = vpack.c.b16 %v1293, %v1292
    %v1332 = vpack.c.b16 %v1295, %v1294
    %v1333 = vpack.c.b16 %v1297, %v1296
    %v1334 = vpack.c.b16 %v1299, %v1298
    %v1335 = vpack.c.b16 %v1301, %v1300
    %v1336 = vpack.c.b16 %v1303, %v1302
    %v1337 = vpack.c.b16 %v1305, %v1304
    %v1338 = vpack.c.b16 %v1307, %v1306
    %v1339 = vpack.c.b16 %v1309, %v1308
    %v1340 = vpack.c.b16 %v1311, %v1310
    %v1341 = vpack.c.b16 %v1313, %v1312
    %v1342 = vpack.c.b16 %v1315, %v1314
    %v1343 = vpack.c.b16 %v1317, %v1316
    %v1344 = vpack.c.b16 %v1319, %v1318
    %v1345 = vpack.c.b16 %v1321, %v1320
    %1370 = vmatpush.bf16.msra.mxu0 %v1329
    %1371 = vmatpush.bf16.msra.mxu0 %v1328
    %1372 = vmatpush.bf16.msra.mxu0 %v1327
    %1373 = vmatpush.bf16.msra.mxu0 %v1326
    %1374 = vmatpush.bf16.msra.mxu0 %v1325
    %1375 = vmatpush.bf16.msra.mxu0 %v1324
    %1376 = vmatpush.bf16.msra.mxu0 %v1323
    %1377 = vmatpush.bf16.msra.mxu0 %v1322
    %1378 = vmatmul.bf16.gmra.mxu0 %v1171
    %v1379 = vpop.f32.mrf.mxu0
    %v1380 = vadd.f32 %v1224, %v1379
    %v1381 = vpop.f32.mrf.mxu0
    %1382 = vdwg.mxu0
    %1383 = vmatpush.bf16.msra.mxu0 %v1337
    %1384 = vmatpush.bf16.msra.mxu0 %v1336
    %1385 = vmatpush.bf16.msra.mxu0 %v1335
    %1386 = vmatpush.bf16.msra.mxu0 %v1334
    %1387 = vmatpush.bf16.msra.mxu0 %v1333
    %1388 = vmatpush.bf16.msra.mxu0 %v1332
    %1389 = vmatpush.bf16.msra.mxu0 %v1331
    %1390 = vmatpush.bf16.msra.mxu0 %v1330
    %1391 = vmatmul.bf16.gmra.mxu0 %v1172
    %v1392 = vpop.f32.mrf.mxu0
    %v1393 = vadd.f32 %v1380, %v1392
    %v1394 = vpop.f32.mrf.mxu0
    %1395 = vdwg.mxu0
    %1396 = vmatpush.bf16.msra.mxu0 %v1345
    %1397 = vmatpush.bf16.msra.mxu0 %v1344
    %1398 = vmatpush.bf16.msra.mxu0 %v1343
    %1399 = vmatpush.bf16.msra.mxu0 %v1342
    %1400 = vmatpush.bf16.msra.mxu0 %v1341
    %1401 = vmatpush.bf16.msra.mxu0 %v1340
    %1402 = vmatpush.bf16.msra.mxu0 %v1339
    %1403 = vmatpush.bf16.msra.mxu0 %v1338
    %1404 = vmatmul.bf16.gmra.mxu0 %v1173
    %v1405 = vpop.f32.mrf.mxu0
    %v1406 = vadd.f32 %v1393, %v1405
    %v1407 = vpop.f32.mrf.mxu0
    %1408 = vdwg.mxu0
    %v1409 = vtanh.pop %v1406
    %1410 = vst [vmem:[#allocation11] sm:$0xff] %v1409
    // Predicated region
    $region50: #{tpu_custom_call.1} parent=1 // pred_check
      _
    $region51: #{tpu_custom_call.1} parent=1 // pred_check_branch
      %1412 = sbr.rel (0) target = $region53
    $region52: #{tpu_custom_call.1} parent=1 // pred_region
      %1414 = vsyncadd [#allocation4], 0
      %s1416 = sshll.u32 [#allocation11], 4
      %s1417 = int_to_ptr.vmem [resolvable:$true] %s1416
      %s1418 = sshll.u32 %s7, 4
      %s1419 = int_to_ptr.hbm [resolvable:$true] %s1418
      %1421 = dma.vmem_to_hbm [thread:$0]  %s1417, 128, %s1419, [#allocation4]
    $region53: #{tpu_custom_call.1} parent=1 // pred_fallthru
      _
    // Predicated region
    $region54: #{tpu_custom_call.1} parent=1 // pred_check
      _
    $region55: #{tpu_custom_call.1} parent=1 // pred_check_branch
      %1423 = sbr.rel (0) target = $region57
    $region56: #{tpu_custom_call.1} parent=1 // pred_region
      %1425 = dma.done [#allocation4], 128
    $region57: #{tpu_custom_call.1} parent=1 // pred_fallthru
      _
    %1426 = vsyncpa [#allocation3], 1
    %1427 = vsyncpa [#allocation6], 1
    %1428 = vsyncpa [#allocation9], 1
    %1429 = vsyncpa [#allocation4], 1

</llo_original>
